<compile_context>
chip_gen: v6e
topology: v6e:2x2x1
jax: 0.10.0
libtpu: 0.0.40
codegen_flags: <defaults>
</compile_context>

<pallas_src>
import jax
import jax.numpy as jnp
from jax.experimental import pallas as pl
from jax.experimental.pallas import tpu as pltpu


def _obs_kernel(vis_ref, hists_ref, out_ref):
    # vis_ref:   (TP, S)     float32
    # hists_ref: (TP, S, T)  float32
    # out_ref:   (TP, T)     float32
    v = jax.nn.sigmoid(vis_ref[...])                      # (TP, S) -- EUP
    num_spots = vis_ref.shape[1]

    # Accumulate over spots with (TP, T) slabs. S is small and static, so a
    # static Python loop is fully unrolled; the live set stays at ~2 slabs
    # instead of the full (TP, S, T) product (which would spill at big TP).
    acc = v[:, 0:1] * hists_ref[:, 0, :]
    for s in range(1, num_spots):
        acc = acc + v[:, s:s + 1] * hists_ref[:, s, :]
    out_ref[...] = acc


def _choose_tile_p(P, S, T, *, max_tile=1024, vmem_budget_bytes=24 << 20):
    """Largest multiple-of-8 row tile that divides P and fits the VMEM budget.

    Budget counts the double-buffered f32 blocks of hists + vis + out, sized
    conservatively so it is safe on v5e/v6e (128 MiB VMEM) and v7x (64 MiB).
    """
    bytes_per_row = 2 * 4 * (S * T + S + T)   # double-buffered, f32
    cap = max(8, vmem_budget_bytes // bytes_per_row)
    cap = min(cap, max_tile, P)

    tile = (cap // 8) * 8
    while tile >= 8:
        if P % tile == 0:
            break
        tile -= 8
    else:
        tile = P  # full-dim block is always a legal block shape

    # Prefer >= 2 grid steps so the single "parallel" axis can be sharded
    # across v7x's two TensorCores (no effect on v5e/v6e correctness/perf).
    if tile == P and P >= 16 and P % 16 == 0:
        tile = P // 2
    return tile


def model_forward(vis, hists, *, tile_p=None):
    """vis: (P, S) raw parameter; hists: (P, S, T). Returns obs: (P, T) float32."""
    vis = vis.astype(jnp.float32)
    hists = hists.astype(jnp.float32)

    P, S = vis.shape
    P2, S2, T = hists.shape
    assert P == P2 and S == S2, "vis and hists must agree on (numPixels, numSpots)"

    if tile_p is None:
        tile_p = _choose_tile_p(P, S, T)
    assert P % tile_p == 0, "tile_p must divide numPixels"
    assert tile_p % 8 == 0 or tile_p == P, (
        "tile_p must be a multiple of 8 (sublane) or equal the full pixel dim")
    # T is always carried as the full (untiled) last dim -> legal block shape;
    # it stays lane-dense (unmasked vst) whenever numBins is a multiple of 128.
    # TODO(synk): optionally stream hists as bf16 (accumulate f32) to halve HBM
    # traffic if the application tolerates it; kept f32 here for exact parity.

    grid = (P // tile_p,)
    return pl.pallas_call(
        _obs_kernel,
        out_shape=jax.ShapeDtypeStruct((P, T), jnp.float32),
        grid_spec=pltpu.PrefetchScalarGridSpec(
            num_scalar_prefetch=0,
            grid=grid,
            in_specs=[
                pl.BlockSpec((tile_p, S), lambda i: (i, 0)),
                pl.BlockSpec((tile_p, S, T), lambda i: (i, 0, 0)),
            ],
            out_specs=pl.BlockSpec((tile_p, T), lambda i: (i, 0)),
        ),
        compiler_params=pltpu.CompilerParams(
            dimension_semantics=("parallel",),
            # Explicit scoped-VMEM limit with headroom over the ~24 MiB of
            # double-buffered blocks; safe on v5e/v6e (128 MiB) and v7x (64 MiB).
            vmem_limit_bytes=48 << 20,
        ),
    )(vis, hists)


if __name__ == "__main__":
    def run_case(num_pixels, num_spots, num_bins, key):
        k_vis, k_h = jax.random.split(key)
        # Deterministic parameter init mirroring Model.__init__:
        # vis = rand(P, S); vis = where(vis > 0.5, 1.0, 0.0)
        vis_raw = jax.random.uniform(
            k_vis, (num_pixels, num_spots), dtype=jnp.float32)
        vis = jnp.where(vis_raw > 0.5, 1.0, 0.0).astype(jnp.float32)
        hists = jax.random.uniform(
            k_h, (num_pixels, num_spots, num_bins), dtype=jnp.float32)

        obs = jax.block_until_ready(model_forward(vis, hists))

        # Pure-JAX reference check (matches torch forward semantics).
        ref = jnp.sum(hists * jax.nn.sigmoid(vis)[:, :, None], axis=1)
        assert obs.shape == (num_pixels, num_bins)
        assert jnp.allclose(obs, ref, atol=1e-5, rtol=1e-5)

    key = jax.random.PRNGKey(0)
    k1, k2 = jax.random.split(key)
    # Small shape consistent with Model(numPixels=16, numSpots=8), 128 bins.
    run_case(16, 8, 128, k1)
    # Slightly larger case to exercise the large-tile / multi-step grid path.
    run_case(512, 8, 128, k2)

    print("KERNEL_OK")
</pallas_src>

<mosaic_0001>
module attributes {stable_mosaic.version = 11 : i64} {
  func.func @_obs_kernel(%arg0: i32, %arg1: memref<8x8xf32, #tpu.memory_space<vmem>>, %arg2: memref<8x8x128xf32, #tpu.memory_space<vmem>>, %arg3: memref<8x128xf32, #tpu.memory_space<vmem>>) attributes {dimension_semantics = [#tpu.dimension_semantics<parallel>], iteration_bounds = array<i64: 2>, scalar_prefetch = 0 : i64, scratch_operands = 0 : i64, tpu.core_type = #tpu.core_type<tc>, window_params = [{transform_indices = @transform_0, window_bounds = array<i64: 8, 8>}, {transform_indices = @transform_1, window_bounds = array<i64: 8, 8, 128>}, {transform_indices = @transform_2, window_bounds = array<i64: 8, 128>}]} {
    %c0 = arith.constant 0 : index
    %c0_0 = arith.constant 0 : index
    %0 = vector.load %arg1[%c0, %c0_0] : memref<8x8xf32, #tpu.memory_space<vmem>>, vector<8x8xf32>
    %1 = arith.negf %0 : vector<8x8xf32>
    %2 = math.exp %1 : vector<8x8xf32>
    %cst = arith.constant 1.000000e+00 : f32
    %3 = vector.broadcast %cst : f32 to vector<8x8xf32>
    %4 = arith.addf %3, %2 : vector<8x8xf32>
    %5 = arith.divf %3, %4 : vector<8x8xf32>
    %6 = vector.extract_strided_slice %5 {offsets = [0, 0], sizes = [8, 1], strides = [1, 1]} : vector<8x8xf32> to vector<8x1xf32>
    %c0_1 = arith.constant 0 : index
    %c0_2 = arith.constant 0 : index
    %c0_3 = arith.constant 0 : index
    %7 = vector.load %arg2[%c0_1, %c0_2, %c0_3] : memref<8x8x128xf32, #tpu.memory_space<vmem>>, vector<8x1x128xf32>
    %8 = vector.shape_cast %7 : vector<8x1x128xf32> to vector<8x128xf32>
    %9 = vector.broadcast %6 : vector<8x1xf32> to vector<8x128xf32>
    %10 = arith.mulf %9, %8 : vector<8x128xf32>
    %11 = vector.extract_strided_slice %5 {offsets = [0, 1], sizes = [8, 1], strides = [1, 1]} : vector<8x8xf32> to vector<8x1xf32>
    %c0_4 = arith.constant 0 : index
    %c1 = arith.constant 1 : index
    %c0_5 = arith.constant 0 : index
    %12 = vector.load %arg2[%c0_4, %c1, %c0_5] : memref<8x8x128xf32, #tpu.memory_space<vmem>>, vector<8x1x128xf32>
    %13 = vector.shape_cast %12 : vector<8x1x128xf32> to vector<8x128xf32>
    %14 = vector.broadcast %11 : vector<8x1xf32> to vector<8x128xf32>
    %15 = arith.mulf %14, %13 : vector<8x128xf32>
    %16 = arith.addf %10, %15 : vector<8x128xf32>
    %17 = vector.extract_strided_slice %5 {offsets = [0, 2], sizes = [8, 1], strides = [1, 1]} : vector<8x8xf32> to vector<8x1xf32>
    %c0_6 = arith.constant 0 : index
    %c2 = arith.constant 2 : index
    %c0_7 = arith.constant 0 : index
    %18 = vector.load %arg2[%c0_6, %c2, %c0_7] : memref<8x8x128xf32, #tpu.memory_space<vmem>>, vector<8x1x128xf32>
    %19 = vector.shape_cast %18 : vector<8x1x128xf32> to vector<8x128xf32>
    %20 = vector.broadcast %17 : vector<8x1xf32> to vector<8x128xf32>
    %21 = arith.mulf %20, %19 : vector<8x128xf32>
    %22 = arith.addf %16, %21 : vector<8x128xf32>
    %23 = vector.extract_strided_slice %5 {offsets = [0, 3], sizes = [8, 1], strides = [1, 1]} : vector<8x8xf32> to vector<8x1xf32>
    %c0_8 = arith.constant 0 : index
    %c3 = arith.constant 3 : index
    %c0_9 = arith.constant 0 : index
    %24 = vector.load %arg2[%c0_8, %c3, %c0_9] : memref<8x8x128xf32, #tpu.memory_space<vmem>>, vector<8x1x128xf32>
    %25 = vector.shape_cast %24 : vector<8x1x128xf32> to vector<8x128xf32>
    %26 = vector.broadcast %23 : vector<8x1xf32> to vector<8x128xf32>
    %27 = arith.mulf %26, %25 : vector<8x128xf32>
    %28 = arith.addf %22, %27 : vector<8x128xf32>
    %29 = vector.extract_strided_slice %5 {offsets = [0, 4], sizes = [8, 1], strides = [1, 1]} : vector<8x8xf32> to vector<8x1xf32>
    %c0_10 = arith.constant 0 : index
    %c4 = arith.constant 4 : index
    %c0_11 = arith.constant 0 : index
    %30 = vector.load %arg2[%c0_10, %c4, %c0_11] : memref<8x8x128xf32, #tpu.memory_space<vmem>>, vector<8x1x128xf32>
    %31 = vector.shape_cast %30 : vector<8x1x128xf32> to vector<8x128xf32>
    %32 = vector.broadcast %29 : vector<8x1xf32> to vector<8x128xf32>
    %33 = arith.mulf %32, %31 : vector<8x128xf32>
    %34 = arith.addf %28, %33 : vector<8x128xf32>
    %35 = vector.extract_strided_slice %5 {offsets = [0, 5], sizes = [8, 1], strides = [1, 1]} : vector<8x8xf32> to vector<8x1xf32>
    %c0_12 = arith.constant 0 : index
    %c5 = arith.constant 5 : index
    %c0_13 = arith.constant 0 : index
    %36 = vector.load %arg2[%c0_12, %c5, %c0_13] : memref<8x8x128xf32, #tpu.memory_space<vmem>>, vector<8x1x128xf32>
    %37 = vector.shape_cast %36 : vector<8x1x128xf32> to vector<8x128xf32>
    %38 = vector.broadcast %35 : vector<8x1xf32> to vector<8x128xf32>
    %39 = arith.mulf %38, %37 : vector<8x128xf32>
    %40 = arith.addf %34, %39 : vector<8x128xf32>
    %41 = vector.extract_strided_slice %5 {offsets = [0, 6], sizes = [8, 1], strides = [1, 1]} : vector<8x8xf32> to vector<8x1xf32>
    %c0_14 = arith.constant 0 : index
    %c6 = arith.constant 6 : index
    %c0_15 = arith.constant 0 : index
    %42 = vector.load %arg2[%c0_14, %c6, %c0_15] : memref<8x8x128xf32, #tpu.memory_space<vmem>>, vector<8x1x128xf32>
    %43 = vector.shape_cast %42 : vector<8x1x128xf32> to vector<8x128xf32>
    %44 = vector.broadcast %41 : vector<8x1xf32> to vector<8x128xf32>
    %45 = arith.mulf %44, %43 : vector<8x128xf32>
    %46 = arith.addf %40, %45 : vector<8x128xf32>
    %47 = vector.extract_strided_slice %5 {offsets = [0, 7], sizes = [8, 1], strides = [1, 1]} : vector<8x8xf32> to vector<8x1xf32>
    %c0_16 = arith.constant 0 : index
    %c7 = arith.constant 7 : index
    %c0_17 = arith.constant 0 : index
    %48 = vector.load %arg2[%c0_16, %c7, %c0_17] : memref<8x8x128xf32, #tpu.memory_space<vmem>>, vector<8x1x128xf32>
    %49 = vector.shape_cast %48 : vector<8x1x128xf32> to vector<8x128xf32>
    %50 = vector.broadcast %47 : vector<8x1xf32> to vector<8x128xf32>
    %51 = arith.mulf %50, %49 : vector<8x128xf32>
    %52 = arith.addf %46, %51 : vector<8x128xf32>
    %c0_18 = arith.constant 0 : index
    %c0_19 = arith.constant 0 : index
    %53 = vector.load %arg3[%c0_18, %c0_19] : memref<8x128xf32, #tpu.memory_space<vmem>>, vector<8x128xf32>
    tpu.vector_store %arg3[%c0_18, %c0_19], %52 {strides = array<i32>} : memref<8x128xf32, #tpu.memory_space<vmem>>, vector<8x128xf32>,
    return
  }
  func.func @transform_0(%arg0: i32) -> (i32, i32) {
    %c0_i32 = arith.constant 0 : i32
    %c0_i32_0 = arith.constant 0 : i32
    return %arg0, %c0_i32 : i32, i32
  }
  func.func @transform_1(%arg0: i32) -> (i32, i32, i32) {
    %c0_i32 = arith.constant 0 : i32
    %c0_i32_0 = arith.constant 0 : i32
    %c0_i32_1 = arith.constant 0 : i32
    return %arg0, %c0_i32, %c0_i32_0 : i32, i32, i32
  }
  func.func @transform_2(%arg0: i32) -> (i32, i32) {
    %c0_i32 = arith.constant 0 : i32
    %c0_i32_0 = arith.constant 0 : i32
    return %arg0, %c0_i32 : i32, i32
  }
}

</mosaic_0001>

<llo_original>
// kernel: tpu_custom_call.1
$region0: #{tpu_custom_call.1}
  #allocation0 [shape = 'u32[]', space=smem, size = 0x4, offset = 0x4, fixed_abs, tag = 'smem constant byte address 0x4 - core index']
  #allocation1 [shape = 'u32[144,128]{1,0:T(1,128)}', space=vmem, size = 0x12000, scoped, tag = 'internal scratch']
  %s0 = inlined_call_operand.vmem [shape: f32[16,8], index: 0, kind: input, shape index: {}]
  %s1 = inlined_call_operand.hbm [shape: f32[16,8,128], index: 1, kind: input, shape index: {}]
  %s2 = inlined_call_operand.hbm [shape: f32[16,128], index: 2, kind: output, shape index: {}]
  %s3 = sld [smem:[#allocation0]]
  $region45: #{tpu_custom_call.1} parent=0
    _
  %s5 = ssub.s32 1, %s3
  %s6 = scalar_select 0, %s5, %s3
  $region1: #{tpu_custom_call.1} parent=0
    #allocation2 [shape = 'u8[65536]{0}', space=vmem, size = 0x10000, scoped, tag = 'input window, operand 1']
    #allocation3 [shape = 's32[2]{0}', space=sflag, size = 0x8, scoped, tag = 'scoped memory for tpu_custom_call.1']
    #allocation4 [shape = 's32[2]{0}', space=sflag, size = 0x8, scoped, tag = 'scoped memory for tpu_custom_call.1']
    #allocation5 [shape = 'u8[8192]{0}', space=vmem, size = 0x2000, scoped, tag = 'output window, operand 0']
    %7 = vsyncpa [#allocation3], 0
    %s8 = scalar_lea.sflag [#allocation3], 1
    %9 = vsyncpa %s8, 0
    %10 = vsyncpa [#allocation4], 0
    %s11 = scalar_lea.sflag [#allocation4], 1
    %12 = vsyncpa %s11, 0
    loop: start=0, step=1, limit=4
    $region2: #{tpu_custom_call.1} parent=1 // loop_pre_header
      _
    $region3: #{tpu_custom_call.1} parent=1 // loop_header
      %s14 = sphi 0, %s18
      %p15 = scmp.ge.s32.totalorder %s14, 4
      %s24 = sphi 0, %s26
      %s27 = sphi 0, %s24
      %s28 = sphi 0, %s27
      %s44 = sphi 0, %s28
      %s50 = sphi 0, %s52
      %s53 = sphi 0, %s50
      %s54 = sphi 0, %s53
      %s70 = sphi 0, %s54
      %s76 = sphi 0, %s78
      %s79 = sphi 0, %s76
      %s80 = sphi 0, %s79
      %s96 = sphi 0, %s80
    $region4: #{tpu_custom_call.1} parent=1 // loop_header_branch
      %17 = sbr.rel (%p15) target = $region8
    $region5: #{tpu_custom_call.1} parent=1 // loop_body
      %s19 = ssub.s32 %s14, 1
      %s20 = ssub.s32 %s14, 2
      %s21 = sadd.s32 %s14, 1
      %s22 = ssub.s32 %s14, %s21
      %p23 = scmp.eq.s32.totalorder %s22, 0
      %s25 = sadd.s32 %s24, 1
      %s26 = scalar_select %p23, %s24, %s25
      %p29 = pneg %p23
      %p30 = scmp.eq.s32.totalorder %s14, 1
      %p31 = por %p29, %p30
      %p32 = scmp.ne.s32.totalorder %s24, %s27
      %p33 = scmp.eq.s32.totalorder %s14, 0
      %p34 = por %p32, %p33
      %p35 = scmp.ne.s32.totalorder %s24, %s27
      %p36 = scmp.eq.s32.totalorder %s19, 1
      %p37 = por %p35, %p36
      %p38 = scmp.ne.s32.totalorder %s27, %s28
      %p39 = scmp.eq.s32.totalorder %s19, 0
      %p40 = por %p38, %p39
      %p41 = scmp.ne.s32.totalorder %s27, %s28
      %p42 = scmp.eq.s32.totalorder %s20, 1
      %p43 = por %p41, %p42
      %p45 = scmp.ne.s32.totalorder %s28, %s44
      %p46 = scmp.eq.s32.totalorder %s20, 0
      %p47 = por %p45, %p46
      %s48 = ssub.s32 %s14, %s21
      %p49 = scmp.eq.s32.totalorder %s48, 0
      %s51 = sadd.s32 %s50, 1
      %s52 = scalar_select %p49, %s50, %s51
      %p55 = pneg %p49
      %p56 = scmp.eq.s32.totalorder %s14, 1
      %p57 = por %p55, %p56
      %p58 = scmp.ne.s32.totalorder %s50, %s53
      %p59 = scmp.eq.s32.totalorder %s14, 0
      %p60 = por %p58, %p59
      %p61 = scmp.ne.s32.totalorder %s50, %s53
      %p62 = scmp.eq.s32.totalorder %s19, 1
      %p63 = por %p61, %p62
      %p64 = scmp.ne.s32.totalorder %s53, %s54
      %p65 = scmp.eq.s32.totalorder %s19, 0
      %p66 = por %p64, %p65
      %p67 = scmp.ne.s32.totalorder %s53, %s54
      %p68 = scmp.eq.s32.totalorder %s20, 1
      %p69 = por %p67, %p68
      %p71 = scmp.ne.s32.totalorder %s54, %s70
      %p72 = scmp.eq.s32.totalorder %s20, 0
      %p73 = por %p71, %p72
      %s74 = ssub.s32 %s14, %s21
      %p75 = scmp.eq.s32.totalorder %s74, 0
      %s77 = sadd.s32 %s76, 1
      %s78 = scalar_select %p75, %s76, %s77
      %p81 = pneg %p75
      %p82 = scmp.eq.s32.totalorder %s14, 1
      %p83 = por %p81, %p82
      %p84 = scmp.ne.s32.totalorder %s76, %s79
      %p85 = scmp.eq.s32.totalorder %s14, 0
      %p86 = por %p84, %p85
      %p87 = scmp.ne.s32.totalorder %s76, %s79
      %p88 = scmp.eq.s32.totalorder %s19, 1
      %p89 = por %p87, %p88
      %p90 = scmp.ne.s32.totalorder %s79, %s80
      %p91 = scmp.eq.s32.totalorder %s19, 0
      %p92 = por %p90, %p91
      %p93 = scmp.ne.s32.totalorder %s79, %s80
      %p94 = scmp.eq.s32.totalorder %s20, 1
      %p95 = por %p93, %p94
      %p97 = scmp.ne.s32.totalorder %s80, %s96
      %p98 = scmp.eq.s32.totalorder %s20, 0
      %p99 = por %p97, %p98
      %p100 = scmp.le.s32.totalorder 1, %s14
      %p101 = scmp.lt.s32.totalorder %s14, 3
      %p102 = pnand %p100, %p101
      %p103 = pneg %p102
      // Predicated region
      $region9: #{tpu_custom_call.1} parent=5 // pred_check
        _
      $region10: #{tpu_custom_call.1} parent=5 // pred_check_branch
        %105 = sbr.rel (%p102) target = $region12
      $region11: #{tpu_custom_call.1} parent=5 // pred_region
        %s106 = ssub.s32 %s14, 1
      $region12: #{tpu_custom_call.1} parent=5 // pred_fallthru
        _
      %p107 = scmp.lt.s32.totalorder %s14, 2
      // Predicated region
      $region13: #{tpu_custom_call.1} parent=5 // pred_check
        %p108 = pneg %p107
      $region14: #{tpu_custom_call.1} parent=5 // pred_check_branch
        %110 = sbr.rel (%p108) target = $region16
      $region15: #{tpu_custom_call.1} parent=5 // pred_region
        // Predicated region
        $region17: #{tpu_custom_call.1} parent=15 // pred_check
          %p111 = pneg %p34
        $region18: #{tpu_custom_call.1} parent=15 // pred_check_branch
          %113 = sbr.rel (%p111) target = $region20
        $region19: #{tpu_custom_call.1} parent=15 // pred_region
          %p114 = scmp.lt.s32.totalorder %s14, 1
          %s115 = scalar_select %p114, %s14, 1
          %s116 = smul.addr %s115, 8
          %s117 = scalar_lea.vmem %s0, %s116
        $region20: #{tpu_custom_call.1} parent=15 // pred_fallthru
          _
        // Predicated region
        $region21: #{tpu_custom_call.1} parent=15 // pred_check
          %p118 = pneg %p60
        $region22: #{tpu_custom_call.1} parent=15 // pred_check_branch
          %120 = sbr.rel (%p118) target = $region24
        $region23: #{tpu_custom_call.1} parent=15 // pred_region
          %s121 = sand.u32 %s50, 1
          %s122 = scalar_lea.sflag [#allocation3], %s121
          %s123 = sand.u32 %s50, 1
          %s124 = smul.addr %s123, 64
          %s125 = scalar_lea.vmem [#allocation2], %s124
          %s126 = smul.u32 8, %s14
          %s128 = ssub.s32 1024, 1024
          %129 = vsyncadd %s122, %s128
          %s130 = smul.addr %s126, 128
          %s131 = scalar_lea.hbm %s1, %s130
          %s132 = sshll.u32 %s125, 4
          %s133 = int_to_ptr.vmem [resolvable:$true] %s132
          %138 = dma.hbm_to_vmem [thread:$0]  %s131, 1024, %s133, %s122, 128, 128, 8
        $region24: #{tpu_custom_call.1} parent=15 // pred_fallthru
          _
      $region16: #{tpu_custom_call.1} parent=5 // pred_fallthru
        _
      %p139 = scmp.le.s32.totalorder 1, %s14
      %p140 = scmp.lt.s32.totalorder %s14, 3
      %p141 = pnand %p139, %p140
      %p142 = pneg %p141
      // Predicated region
      $region25: #{tpu_custom_call.1} parent=5 // pred_check
        _
      $region26: #{tpu_custom_call.1} parent=5 // pred_check_branch
        %144 = sbr.rel (%p141) target = $region28
      $region27: #{tpu_custom_call.1} parent=5 // pred_region
        %s145 = ssub.s32 %s14, 1
        %s146 = sand.u32 %s53, 1
        %s147 = scalar_lea.sflag [#allocation3], %s146
        %s148 = sand.u32 %s53, 1
        %s149 = smul.addr %s148, 64
        %s150 = scalar_lea.vmem [#allocation2], %s149
        // Predicated region
        $region29: #{tpu_custom_call.1} parent=27 // pred_check
          %p151 = pneg %p66
        $region30: #{tpu_custom_call.1} parent=27 // pred_check_branch
          %153 = sbr.rel (%p151) target = $region32
        $region31: #{tpu_custom_call.1} parent=27 // pred_region
          %154 = dma.done %s147, 1024
        $region32: #{tpu_custom_call.1} parent=27 // pred_fallthru
          _
        %p155 = scmp.lt.s32.totalorder %s19, 1
        %s156 = scalar_select %p155, %s19, 1
        %s157 = smul.addr %s156, 8
        %s158 = scalar_lea.vmem %s0, %s157
        %p159 = pneg %p40
        %p160 = pneg %p37
        %s161 = sand.u32 %s53, 1
        %s162 = scalar_lea.sflag [#allocation3], %s161
        %s163 = sand.u32 %s53, 1
        %s164 = smul.addr %s163, 64
        %s165 = scalar_lea.vmem [#allocation2], %s164
        %p166 = pneg %p66
        %p167 = pneg %p63
        %p168 = pneg %p92
        %p169 = pneg %p89
        %s170 = sand.u32 %s79, 1
        %s171 = scalar_lea.sflag [#allocation4], %s170
        %s172 = sand.u32 %s79, 1
        %s173 = smul.addr %s172, 8
        %s174 = scalar_lea.vmem [#allocation5], %s173
        %p175 = scmp.lt.s32.totalorder %s19, 1
        %s176 = scalar_select %p175, %s19, 1
        %s177 = smul.addr %s176, 8
        %s178 = scalar_lea.vmem %s0, %s177
        %s179 = smul.u32 8, %s19
        %v180 = vld [vmem:[%s178] sm:$0xff]
        %v181 = vxor.u32 %v180, 2147483648
        %v182 = vmul.f32 %v181, 1.442695
        %v183 = vpow.pop %v182
        %v184 = vadd.f32 %v183, 1.0
        %v185 = vrcp.pop %v184
        %v186 = vmul.f32 1.0, %v185
        %v187 = vld [vmem:[%s150] sm:$0x1]
        %v188 = vld [vmem:[%s150 + $0x8] sm:$0x1]
        %v189 = vld [vmem:[%s150 + $0x10] sm:$0x1]
        %v190 = vld [vmem:[%s150 + $0x18] sm:$0x1]
        %v191 = vld [vmem:[%s150 + $0x20] sm:$0x1]
        %v192 = vld [vmem:[%s150 + $0x28] sm:$0x1]
        %v193 = vld [vmem:[%s150 + $0x30] sm:$0x1]
        %v194 = vld [vmem:[%s150 + $0x38] sm:$0x1]
        %196 = vset.pattern.permute.xlu0 0
        %197 = vperm.xlu0 %196, %v186
        %v198 = vpop.permute.xlu0 %197
        %v208 = vrot.slane %v188, 7
        %vm209 = vcmask 1041409
        %v210 = vsel %vm209, %v208, %v187
        %v211 = vrot.slane %v189, 6
        %vm212 = vcmask 1042434
        %v213 = vsel %vm212, %v211, %v210
        %v214 = vrot.slane %v190, 5
        %vm215 = vcmask 1043459
        %v216 = vsel %vm215, %v214, %v213
        %v217 = vrot.slane %v191, 4
        %vm218 = vcmask 1044484
        %v219 = vsel %vm218, %v217, %v216
        %v220 = vrot.slane %v192, 3
        %vm221 = vcmask 1045509
        %v222 = vsel %vm221, %v220, %v219
        %v223 = vrot.slane %v193, 2
        %vm224 = vcmask 1046534
        %v225 = vsel %vm224, %v223, %v222
        %v226 = vrot.slane %v194, 1
        %vm227 = vcmask 1047559
        %v228 = vsel %vm227, %v226, %v225
        %v230 = vmul.f32 %v198, %v228
        %v231 = vld [vmem:[%s150 + $0x1] sm:$0x1]
        %v232 = vld [vmem:[%s150 + $0x9] sm:$0x1]
        %v233 = vld [vmem:[%s150 + $0x11] sm:$0x1]
        %v234 = vld [vmem:[%s150 + $0x19] sm:$0x1]
        %v235 = vld [vmem:[%s150 + $0x21] sm:$0x1]
        %v236 = vld [vmem:[%s150 + $0x29] sm:$0x1]
        %v237 = vld [vmem:[%s150 + $0x31] sm:$0x1]
        %v238 = vld [vmem:[%s150 + $0x39] sm:$0x1]
        %239 = vset.pattern.permute.xlu0 1
        %240 = vperm.xlu0 %239, %v186
        %v241 = vpop.permute.xlu0 %240
        %v251 = vrot.slane %v232, 7
        %v252 = vsel %vm209, %v251, %v231
        %v253 = vrot.slane %v233, 6
        %v254 = vsel %vm212, %v253, %v252
        %v255 = vrot.slane %v234, 5
        %v256 = vsel %vm215, %v255, %v254
        %v257 = vrot.slane %v235, 4
        %v258 = vsel %vm218, %v257, %v256
        %v259 = vrot.slane %v236, 3
        %v260 = vsel %vm221, %v259, %v258
        %v261 = vrot.slane %v237, 2
        %v262 = vsel %vm224, %v261, %v260
        %v263 = vrot.slane %v238, 1
        %v264 = vsel %vm227, %v263, %v262
        %v266 = vmul.f32 %v241, %v264
        %v267 = vadd.f32 %v230, %v266
        %v268 = vld [vmem:[%s150 + $0x2] sm:$0x1]
        %v269 = vld [vmem:[%s150 + $0xa] sm:$0x1]
        %v270 = vld [vmem:[%s150 + $0x12] sm:$0x1]
        %v271 = vld [vmem:[%s150 + $0x1a] sm:$0x1]
        %v272 = vld [vmem:[%s150 + $0x22] sm:$0x1]
        %v273 = vld [vmem:[%s150 + $0x2a] sm:$0x1]
        %v274 = vld [vmem:[%s150 + $0x32] sm:$0x1]
        %v275 = vld [vmem:[%s150 + $0x3a] sm:$0x1]
        %276 = vset.pattern.permute.xlu0 2
        %277 = vperm.xlu0 %276, %v186
        %v278 = vpop.permute.xlu0 %277
        %v288 = vrot.slane %v269, 7
        %v289 = vsel %vm209, %v288, %v268
        %v290 = vrot.slane %v270, 6
        %v291 = vsel %vm212, %v290, %v289
        %v292 = vrot.slane %v271, 5
        %v293 = vsel %vm215, %v292, %v291
        %v294 = vrot.slane %v272, 4
        %v295 = vsel %vm218, %v294, %v293
        %v296 = vrot.slane %v273, 3
        %v297 = vsel %vm221, %v296, %v295
        %v298 = vrot.slane %v274, 2
        %v299 = vsel %vm224, %v298, %v297
        %v300 = vrot.slane %v275, 1
        %v301 = vsel %vm227, %v300, %v299
        %v303 = vmul.f32 %v278, %v301
        %v304 = vadd.f32 %v267, %v303
        %v305 = vld [vmem:[%s150 + $0x3] sm:$0x1]
        %v306 = vld [vmem:[%s150 + $0xb] sm:$0x1]
        %v307 = vld [vmem:[%s150 + $0x13] sm:$0x1]
        %v308 = vld [vmem:[%s150 + $0x1b] sm:$0x1]
        %v309 = vld [vmem:[%s150 + $0x23] sm:$0x1]
        %v310 = vld [vmem:[%s150 + $0x2b] sm:$0x1]
        %v311 = vld [vmem:[%s150 + $0x33] sm:$0x1]
        %v312 = vld [vmem:[%s150 + $0x3b] sm:$0x1]
        %313 = vset.pattern.permute.xlu0 3
        %314 = vperm.xlu0 %313, %v186
        %v315 = vpop.permute.xlu0 %314
        %v325 = vrot.slane %v306, 7
        %v326 = vsel %vm209, %v325, %v305
        %v327 = vrot.slane %v307, 6
        %v328 = vsel %vm212, %v327, %v326
        %v329 = vrot.slane %v308, 5
        %v330 = vsel %vm215, %v329, %v328
        %v331 = vrot.slane %v309, 4
        %v332 = vsel %vm218, %v331, %v330
        %v333 = vrot.slane %v310, 3
        %v334 = vsel %vm221, %v333, %v332
        %v335 = vrot.slane %v311, 2
        %v336 = vsel %vm224, %v335, %v334
        %v337 = vrot.slane %v312, 1
        %v338 = vsel %vm227, %v337, %v336
        %v340 = vmul.f32 %v315, %v338
        %v341 = vadd.f32 %v304, %v340
        %v342 = vld [vmem:[%s150 + $0x4] sm:$0x1]
        %v343 = vld [vmem:[%s150 + $0xc] sm:$0x1]
        %v344 = vld [vmem:[%s150 + $0x14] sm:$0x1]
        %v345 = vld [vmem:[%s150 + $0x1c] sm:$0x1]
        %v346 = vld [vmem:[%s150 + $0x24] sm:$0x1]
        %v347 = vld [vmem:[%s150 + $0x2c] sm:$0x1]
        %v348 = vld [vmem:[%s150 + $0x34] sm:$0x1]
        %v349 = vld [vmem:[%s150 + $0x3c] sm:$0x1]
        %350 = vset.pattern.permute.xlu0 4
        %351 = vperm.xlu0 %350, %v186
        %v352 = vpop.permute.xlu0 %351
        %v362 = vrot.slane %v343, 7
        %v363 = vsel %vm209, %v362, %v342
        %v364 = vrot.slane %v344, 6
        %v365 = vsel %vm212, %v364, %v363
        %v366 = vrot.slane %v345, 5
        %v367 = vsel %vm215, %v366, %v365
        %v368 = vrot.slane %v346, 4
        %v369 = vsel %vm218, %v368, %v367
        %v370 = vrot.slane %v347, 3
        %v371 = vsel %vm221, %v370, %v369
        %v372 = vrot.slane %v348, 2
        %v373 = vsel %vm224, %v372, %v371
        %v374 = vrot.slane %v349, 1
        %v375 = vsel %vm227, %v374, %v373
        %v377 = vmul.f32 %v352, %v375
        %v378 = vadd.f32 %v341, %v377
        %v379 = vld [vmem:[%s150 + $0x5] sm:$0x1]
        %v380 = vld [vmem:[%s150 + $0xd] sm:$0x1]
        %v381 = vld [vmem:[%s150 + $0x15] sm:$0x1]
        %v382 = vld [vmem:[%s150 + $0x1d] sm:$0x1]
        %v383 = vld [vmem:[%s150 + $0x25] sm:$0x1]
        %v384 = vld [vmem:[%s150 + $0x2d] sm:$0x1]
        %v385 = vld [vmem:[%s150 + $0x35] sm:$0x1]
        %v386 = vld [vmem:[%s150 + $0x3d] sm:$0x1]
        %387 = vset.pattern.permute.xlu0 5
        %388 = vperm.xlu0 %387, %v186
        %v389 = vpop.permute.xlu0 %388
        %v399 = vrot.slane %v380, 7
        %v400 = vsel %vm209, %v399, %v379
        %v401 = vrot.slane %v381, 6
        %v402 = vsel %vm212, %v401, %v400
        %v403 = vrot.slane %v382, 5
        %v404 = vsel %vm215, %v403, %v402
        %v405 = vrot.slane %v383, 4
        %v406 = vsel %vm218, %v405, %v404
        %v407 = vrot.slane %v384, 3
        %v408 = vsel %vm221, %v407, %v406
        %v409 = vrot.slane %v385, 2
        %v410 = vsel %vm224, %v409, %v408
        %v411 = vrot.slane %v386, 1
        %v412 = vsel %vm227, %v411, %v410
        %v414 = vmul.f32 %v389, %v412
        %v415 = vadd.f32 %v378, %v414
        %v416 = vld [vmem:[%s150 + $0x6] sm:$0x1]
        %v417 = vld [vmem:[%s150 + $0xe] sm:$0x1]
        %v418 = vld [vmem:[%s150 + $0x16] sm:$0x1]
        %v419 = vld [vmem:[%s150 + $0x1e] sm:$0x1]
        %v420 = vld [vmem:[%s150 + $0x26] sm:$0x1]
        %v421 = vld [vmem:[%s150 + $0x2e] sm:$0x1]
        %v422 = vld [vmem:[%s150 + $0x36] sm:$0x1]
        %v423 = vld [vmem:[%s150 + $0x3e] sm:$0x1]
        %424 = vset.pattern.permute.xlu0 6
        %425 = vperm.xlu0 %424, %v186
        %v426 = vpop.permute.xlu0 %425
        %v436 = vrot.slane %v417, 7
        %v437 = vsel %vm209, %v436, %v416
        %v438 = vrot.slane %v418, 6
        %v439 = vsel %vm212, %v438, %v437
        %v440 = vrot.slane %v419, 5
        %v441 = vsel %vm215, %v440, %v439
        %v442 = vrot.slane %v420, 4
        %v443 = vsel %vm218, %v442, %v441
        %v444 = vrot.slane %v421, 3
        %v445 = vsel %vm221, %v444, %v443
        %v446 = vrot.slane %v422, 2
        %v447 = vsel %vm224, %v446, %v445
        %v448 = vrot.slane %v423, 1
        %v449 = vsel %vm227, %v448, %v447
        %v451 = vmul.f32 %v426, %v449
        %v452 = vadd.f32 %v415, %v451
        %v453 = vld [vmem:[%s150 + $0x7] sm:$0x1]
        %v454 = vld [vmem:[%s150 + $0xf] sm:$0x1]
        %v455 = vld [vmem:[%s150 + $0x17] sm:$0x1]
        %v456 = vld [vmem:[%s150 + $0x1f] sm:$0x1]
        %v457 = vld [vmem:[%s150 + $0x27] sm:$0x1]
        %v458 = vld [vmem:[%s150 + $0x2f] sm:$0x1]
        %v459 = vld [vmem:[%s150 + $0x37] sm:$0x1]
        %v460 = vld [vmem:[%s150 + $0x3f] sm:$0x1]
        %461 = vset.pattern.permute.xlu0 7
        %462 = vperm.xlu0 %461, %v186
        %v463 = vpop.permute.xlu0 %462
        %v473 = vrot.slane %v454, 7
        %v474 = vsel %vm209, %v473, %v453
        %v475 = vrot.slane %v455, 6
        %v476 = vsel %vm212, %v475, %v474
        %v477 = vrot.slane %v456, 5
        %v478 = vsel %vm215, %v477, %v476
        %v479 = vrot.slane %v457, 4
        %v480 = vsel %vm218, %v479, %v478
        %v481 = vrot.slane %v458, 3
        %v482 = vsel %vm221, %v481, %v480
        %v483 = vrot.slane %v459, 2
        %v484 = vsel %vm224, %v483, %v482
        %v485 = vrot.slane %v460, 1
        %v486 = vsel %vm227, %v485, %v484
        %v488 = vmul.f32 %v463, %v486
        %v489 = vadd.f32 %v452, %v488
        %490 = vst [vmem:[%s174] sm:$0xff] %v489
        %s491 = sand.u32 %s79, 1
        %s492 = scalar_lea.sflag [#allocation4], %s491
        %s493 = sand.u32 %s79, 1
        %s494 = smul.addr %s493, 8
        %s495 = scalar_lea.vmem [#allocation5], %s494
        // Predicated region
        $region33: #{tpu_custom_call.1} parent=27 // pred_check
          %p496 = pneg %p89
        $region34: #{tpu_custom_call.1} parent=27 // pred_check_branch
          %498 = sbr.rel (%p496) target = $region36
        $region35: #{tpu_custom_call.1} parent=27 // pred_region
          %s500 = ssub.s32 128, 128
          %501 = vsyncadd %s492, %s500
          %s502 = smul.addr %s19, 128
          %s503 = scalar_lea.hbm %s2, %s502
          %s505 = sshll.u32 %s495, 4
          %s506 = int_to_ptr.vmem [resolvable:$true] %s505
          %508 = dma.vmem_to_hbm [thread:$0]  %s506, 128, %s503, %s492
        $region36: #{tpu_custom_call.1} parent=27 // pred_fallthru
          _
      $region28: #{tpu_custom_call.1} parent=5 // pred_fallthru
        _
      %p509 = scmp.le.s32.totalorder 2, %s14
      // Predicated region
      $region37: #{tpu_custom_call.1} parent=5 // pred_check
        %p510 = pneg %p509
      $region38: #{tpu_custom_call.1} parent=5 // pred_check_branch
        %512 = sbr.rel (%p510) target = $region40
      $region39: #{tpu_custom_call.1} parent=5 // pred_region
        %s513 = ssub.s32 %s14, 2
        // Predicated region
        $region41: #{tpu_custom_call.1} parent=39 // pred_check
          %p514 = pneg %p95
        $region42: #{tpu_custom_call.1} parent=39 // pred_check_branch
          %516 = sbr.rel (%p514) target = $region44
        $region43: #{tpu_custom_call.1} parent=39 // pred_region
          %s517 = sand.u32 %s80, 1
          %s518 = scalar_lea.sflag [#allocation4], %s517
          %s519 = sand.u32 %s80, 1
          %s520 = smul.addr %s519, 8
          %s521 = scalar_lea.vmem [#allocation5], %s520
          %522 = dma.done %s518, 128
        $region44: #{tpu_custom_call.1} parent=39 // pred_fallthru
          _
      $region40: #{tpu_custom_call.1} parent=5 // pred_fallthru
        _
    $region6: #{tpu_custom_call.1} parent=1 // loop_footer
      %s18 = sadd.s32 1, %s14
    $region7: #{tpu_custom_call.1} parent=1 // loop_footer_branch
      %13 = sbr.rel target = $region3
    $region8: #{tpu_custom_call.1} parent=1 // loop_exit
      _
    %523 = vsyncpa [#allocation3], 1
    %s524 = scalar_lea.sflag [#allocation3], 1
    %525 = vsyncpa %s524, 1
    %526 = vsyncpa [#allocation4], 1
    %s527 = scalar_lea.sflag [#allocation4], 1
    %528 = vsyncpa %s527, 1

</llo_original>
